<compile_context>
chip_gen: v6e
topology: v6e:2x2x1
jax: 0.10.0
libtpu: 0.0.40
codegen_flags: <defaults>
</compile_context>

<pallas_src>
import math
from functools import partial

import jax
import jax.numpy as jnp
from jax import lax
from jax.experimental import pallas as pl
from jax.experimental.pallas import tpu as pltpu

_INV_SQRT2 = 1.0 / math.sqrt(2.0)


def _mlp_kernel(x_ref, w1_ref, b1_ref, w2_ref, b2_ref, o_ref, *scratch,
                sub, n_sub, n_hid, compute_dtype):
    """One (batch, spatial-tile, hidden-tile) grid step.

    x_ref  : [Cin,  tL]    activations (channels x spatial lanes)
    w1_ref : [tHid, Cin]   fc1 weight block (PyTorch [out, in] layout)
    b1_ref : [tHid, 1]
    w2_ref : [Cout, tHid]  fc2 weight block
    b2_ref : [Cout, 1]
    o_ref  : [Cout, tL]
    scratch: optional [Cout, tL] f32 accumulator (only when the hidden dim is
             streamed over grid axis 2, i.e. n_hid > 1)
    """
    acc_ref = scratch[0] if scratch else None

    x = x_ref[...]
    if compute_dtype is not None:
        x = x.astype(compute_dtype)

    def chunk(c):
        lo, hi = c * sub, (c + 1) * sub          # static slice: zero cost
        w1c = w1_ref[lo:hi, :]
        w2c = w2_ref[:, lo:hi]
        if compute_dtype is not None:
            w1c = w1c.astype(compute_dtype)
            w2c = w2c.astype(compute_dtype)
        # fc1 slice: [sub, tL]; native-dtype operands, f32 accumulation on MXU.
        h = jnp.dot(w1c, x, preferred_element_type=jnp.float32)
        h = h + b1_ref[lo:hi, :].astype(jnp.float32)
        # exact GELU (erf form == PyTorch nn.GELU default), in f32.
        h = 0.5 * h * (1.0 + lax.erf(h * _INV_SQRT2))
        # dropout(p=0.0) -> identity
        # fc2 partial product: [Cout, tL]
        return jnp.dot(w2c, h.astype(w2c.dtype),
                       preferred_element_type=jnp.float32)

    # Accumulate the hidden sub-chunks locally (bounds the live GELU
    # intermediate to [sub, tL] and lets the scheduler overlap chunks).
    part = chunk(0)
    for c in range(1, n_sub):
        part = part + chunk(c)

    if acc_ref is None:
        # Whole hidden dim resident: no scratch, no zero-init, single store.
        o_ref[...] = (part + b2_ref[...].astype(jnp.float32)).astype(o_ref.dtype)
    else:
        hid = pl.program_id(2)
        last = n_hid - 1

        @pl.when(hid == 0)
        def _first():                      # direct write, no zeros pass
            acc_ref[...] = part

        @pl.when(jnp.logical_and(hid > 0, hid < last))
        def _mid():
            acc_ref[...] += part

        @pl.when(hid == last)
        def _last():                       # fold final partial + bias into o_ref
            o_ref[...] = (acc_ref[...] + part
                          + b2_ref[...].astype(jnp.float32)).astype(o_ref.dtype)


def _round_up(x, m):
    return (x + m - 1) // m * m


@partial(jax.jit, static_argnames=("compute_dtype", "sub_chunk", "max_hidden_tile"))
def mlp_channels_first(x_nchw, w1, b1, w2, b2, *, compute_dtype=None,
                       sub_chunk=None, max_hidden_tile=None):
    """Fused 1x1-conv MLP on NCHW input.

    x_nchw : [N, Cin, H, W]
    w1     : [Hid, Cin]   (PyTorch nn.Linear layout [out_features, in_features])
    b1     : [Hid]
    w2     : [Cout, Hid]
    b2     : [Cout]
    returns: [N, Cout, H, W]
    """
    N, Cin, H, W = x_nchw.shape
    Hid = w1.shape[0]
    Cout = w2.shape[0]
    HW = H * W
    item = jnp.dtype(x_nchw.dtype).itemsize

    # ---- per-generation VMEM budget -------------------------------------
    try:
        info = pltpu.get_tpu_info()
        vmem_cap = getattr(info, "vmem_capacity_bytes", None) or (64 << 20)
    except Exception:                 # conservative fallback: v7x per-TC size
        vmem_cap = 64 << 20
    budget = (vmem_cap * 3) // 4      # headroom for Mosaic internal scratch/DMA

    # Hidden-dim sub-chunk target (rows processed per in-kernel step).
    SUB = int(sub_chunk) if sub_chunk is not None else 512

    # ---- spatial (lane) tile ---------------------------------------------
    # Big lane tiles amortize the ~0.35us/step overhead and, when the hidden
    # dim is streamed, the per-(n,l) W1/W2 re-fetch from HBM.
    tl_target = 2048 if vmem_cap >= (100 << 20) else 1024
    tl = HW if HW <= tl_target else (tl_target // 128) * 128

    def vmem_use(thid_, tl_, streamed):
        wbuf = 2 if streamed else 1                  # dbl-buffer streamed weights
        sub_ = min(SUB, thid_)
        return (2 * Cin * tl_ * item                 # x block (double-buffered)
                + 2 * Cout * tl_ * item              # out block (double-buffered)
                + (4 * Cout * tl_ if streamed else 0)  # f32 accumulator scratch
                + wbuf * thid_ * Cin * item          # w1 block
                + wbuf * Cout * thid_ * item         # w2 block
                + wbuf * thid_ * item + Cout * item  # biases
                + 3 * 4 * sub_ * tl_)                # h sub-chunk + erf temps

    # ---- hidden tiling ----------------------------------------------------
    # Prefer keeping the whole hidden dim resident (no weight re-streaming).
    hid_res = Hid if Hid <= SUB else _round_up(Hid, SUB)
    resident = vmem_use(hid_res, tl, streamed=False) <= budget
    if max_hidden_tile is not None and Hid > SUB:
        resident = resident and hid_res <= max_hidden_tile
    if resident:
        thid, n_h = hid_res, 1
    else:
        thid0 = 1024 if vmem_cap >= (100 << 20) else 512
        if max_hidden_tile is not None:
            thid0 = min(thid0, max_hidden_tile)
        thid = max(SUB, min(_round_up(thid0, SUB), hid_res))
        # Shrink the hidden block (not tl) first: weight streaming wants big tl.
        while thid > SUB and vmem_use(thid, tl, True) > budget:
            thid -= SUB
        while tl > 256 and vmem_use(thid, tl, True) > budget:   # last resort
            tl = max(256, (tl // 2 // 128) * 128)
        n_h = _round_up(Hid, thid) // thid

    hid_pad = n_h * thid
    if hid_pad != Hid:
        # Padded fc1 rows give gelu(0)=0 and the matching fc2 columns are zero,
        # so the padding contributes nothing to the output.
        w1 = jnp.pad(w1, ((0, hid_pad - Hid), (0, 0)))
        b1 = jnp.pad(b1, ((0, hid_pad - Hid),))
        w2 = jnp.pad(w2, ((0, 0), (0, hid_pad - Hid)))

    sub = min(SUB, thid)
    n_sub = thid // sub
    n_l = pl.cdiv(HW, tl)              # partial last tile masked by Pallas

    # Channels-first kept: spatial -> lane axis; pure reshape (no transpose).
    x3 = x_nchw.reshape(N, Cin, HW)
    b1_2d = b1.reshape(-1, 1)          # broadcasts over lanes
    b2_2d = b2.reshape(-1, 1)

    # Blocks with a grid-constant index map are single-buffered (no pointless
    # double copy in VMEM); streamed weights keep default double-buffering.
    resident_mode = {"pipeline_mode": pl.Buffered(1)}
    stream_mode = {} if n_h > 1 else resident_mode

    in_specs = [
        pl.BlockSpec((None, Cin, tl), lambda n, l, h: (n, 0, l)),
        pl.BlockSpec((thid, Cin), lambda n, l, h: (h, 0), **stream_mode),
        pl.BlockSpec((thid, 1), lambda n, l, h: (h, 0), **stream_mode),
        pl.BlockSpec((Cout, thid), lambda n, l, h: (0, h), **stream_mode),
        pl.BlockSpec((Cout, 1), lambda n, l, h: (0, 0), **resident_mode),
    ]
    out_specs = pl.BlockSpec((None, Cout, tl), lambda n, l, h: (n, 0, l))

    scratch = [pltpu.VMEM((Cout, tl), jnp.float32)] if n_h > 1 else []

    # Honest traffic estimate: streamed weights are re-fetched per (n, l) pair.
    reuse = N * n_l if n_h > 1 else 1
    wbytes = (w1.size * w1.dtype.itemsize + w2.size * w2.dtype.itemsize
              + b1.size * b1.dtype.itemsize + b2.size * b2.dtype.itemsize)
    cost = pl.CostEstimate(
        flops=2 * N * HW * (Cin * hid_pad + hid_pad * Cout),
        transcendentals=N * HW * hid_pad,
        bytes_accessed=x3.size * item + N * HW * Cout * item + wbytes * reuse,
    )

    kernel = partial(_mlp_kernel, sub=sub, n_sub=n_sub, n_hid=n_h,
                     compute_dtype=compute_dtype)

    out3 = pl.pallas_call(
        kernel,
        out_shape=jax.ShapeDtypeStruct((N, Cout, HW), x_nchw.dtype),
        grid_spec=pltpu.PrefetchScalarGridSpec(
            num_scalar_prefetch=0,
            grid=(N, n_l, n_h),
            in_specs=in_specs,
            out_specs=out_specs,
            scratch_shapes=scratch,
        ),
        compiler_params=pltpu.CompilerParams(
            dimension_semantics=("parallel", "parallel", "arbitrary"),
            vmem_limit_bytes=int(budget),
        ),
        cost_estimate=cost,
    )(x3, w1, b1_2d, w2, b2_2d)

    return out3.reshape(N, Cout, H, W)


def _reference(x_nchw, w1, b1, w2, b2):
    # fc1/fc2 as 1x1 convs over NCHW == per-pixel linear over channels.
    x = x_nchw.astype(jnp.float32)
    h = jnp.einsum("oc,nchw->nohw", w1.astype(jnp.float32), x) \
        + b1.astype(jnp.float32).reshape(1, -1, 1, 1)
    h = 0.5 * h * (1.0 + lax.erf(h * _INV_SQRT2))
    o = jnp.einsum("oc,nchw->nohw", w2.astype(jnp.float32), h) \
        + b2.astype(jnp.float32).reshape(1, -1, 1, 1)
    return o.astype(x_nchw.dtype)


def _make_params(key, cin, hid, cout):
    k1, kb1, k2, kb2 = jax.random.split(key, 4)
    bound1 = 1.0 / math.sqrt(cin)
    w1 = jax.random.uniform(k1, (hid, cin), minval=-bound1, maxval=bound1,
                            dtype=jnp.float32)
    b1 = jax.random.uniform(kb1, (hid,), minval=-bound1, maxval=bound1,
                            dtype=jnp.float32)
    bound2 = 1.0 / math.sqrt(hid)
    w2 = jax.random.uniform(k2, (cout, hid), minval=-bound2, maxval=bound2,
                            dtype=jnp.float32)
    b2 = jax.random.uniform(kb2, (cout,), minval=-bound2, maxval=bound2,
                            dtype=jnp.float32)
    return w1, b1, w2, b2


if __name__ == "__main__":
    key = jax.random.PRNGKey(0)
    kx1, kp1, kx2, kp2, kx3, kp3 = jax.random.split(key, 6)

    # --- test 1: module default shapes (resident, single chunk) -----------
    N, Cin, H, W = 2, 4, 16, 16
    hidden, Cout = 8, 4           # out_features defaults to in_features
    x = jax.random.normal(kx1, (N, Cin, H, W), dtype=jnp.float32)
    w1, b1, w2, b2 = _make_params(kp1, Cin, hidden, Cout)
    out = jax.block_until_ready(mlp_channels_first(x, w1, b1, w2, b2))
    ref = _reference(x, w1, b1, w2, b2)
    assert out.shape == (N, Cout, H, W)
    assert jnp.allclose(out, ref, atol=1e-4, rtol=1e-4), "mismatch (test 1)"

    # --- test 2: hidden padding + in-kernel multi-chunk path --------------
    N2, Cin2, H2, W2, hid2, Cout2 = 1, 8, 8, 8, 200, 8
    x2 = jax.random.normal(kx2, (N2, Cin2, H2, W2), dtype=jnp.float32)
    p2 = _make_params(kp2, Cin2, hid2, Cout2)
    out2 = jax.block_until_ready(
        mlp_channels_first(x2, *p2, sub_chunk=128))
    ref2 = _reference(x2, *p2)
    assert jnp.allclose(out2, ref2, atol=2e-3, rtol=2e-3), "mismatch (test 2)"

    # --- test 3: streamed hidden dim (grid axis 2 + f32 accumulator) ------
    N3, Cin3, H3, W3, hid3, Cout3 = 1, 8, 8, 8, 256, 8
    x3 = jax.random.normal(kx3, (N3, Cin3, H3, W3), dtype=jnp.float32)
    p3 = _make_params(kp3, Cin3, hid3, Cout3)
    out3 = jax.block_until_ready(
        mlp_channels_first(x3, *p3, sub_chunk=128, max_hidden_tile=128))
    ref3 = _reference(x3, *p3)
    assert jnp.allclose(out3, ref3, atol=2e-3, rtol=2e-3), "mismatch (test 3)"

    print("KERNEL_OK")
</pallas_src>

<mosaic_0001>
module attributes {stable_mosaic.version = 11 : i64} {
  func.func @_mlp_kernel(%arg0: i32, %arg1: i32, %arg2: i32, %arg3: memref<1x4x256xf32, #tpu.memory_space<vmem>>, %arg4: memref<8x4xf32, #tpu.memory_space<vmem>>, %arg5: memref<8x1xf32, #tpu.memory_space<vmem>>, %arg6: memref<4x8xf32, #tpu.memory_space<vmem>>, %arg7: memref<4x1xf32, #tpu.memory_space<vmem>>, %arg8: memref<1x4x256xf32, #tpu.memory_space<vmem>>) attributes {dimension_semantics = [#tpu.dimension_semantics<parallel>, #tpu.dimension_semantics<parallel>, #tpu.dimension_semantics<arbitrary>], iteration_bounds = array<i64: 2, 1, 1>, scalar_prefetch = 0 : i64, scratch_operands = 0 : i64, tpu.core_type = #tpu.core_type<tc>, window_params = [{transform_indices = @transform_0, window_bounds = array<i64: 1, 4, 256>}, {pipeline_mode = #tpu.pipeline_mode<synchronous>, transform_indices = @transform_1, window_bounds = array<i64: 8, 4>}, {pipeline_mode = #tpu.pipeline_mode<synchronous>, transform_indices = @transform_2, window_bounds = array<i64: 8, 1>}, {pipeline_mode = #tpu.pipeline_mode<synchronous>, transform_indices = @transform_3, window_bounds = array<i64: 4, 8>}, {pipeline_mode = #tpu.pipeline_mode<synchronous>, transform_indices = @transform_4, window_bounds = array<i64: 4, 1>}, {transform_indices = @transform_5, window_bounds = array<i64: 1, 4, 256>}]} {
    %c0 = arith.constant 0 : index
    %c0_0 = arith.constant 0 : index
    %c0_1 = arith.constant 0 : index
    %0 = vector.load %arg3[%c0, %c0_0, %c0_1] : memref<1x4x256xf32, #tpu.memory_space<vmem>>, vector<1x4x256xf32>
    %1 = vector.shape_cast %0 : vector<1x4x256xf32> to vector<4x256xf32>
    %c0_2 = arith.constant 0 : index
    %c0_3 = arith.constant 0 : index
    %2 = vector.load %arg4[%c0_2, %c0_3] : memref<8x4xf32, #tpu.memory_space<vmem>>, vector<8x4xf32>
    %c0_4 = arith.constant 0 : index
    %c0_5 = arith.constant 0 : index
    %3 = vector.load %arg6[%c0_4, %c0_5] : memref<4x8xf32, #tpu.memory_space<vmem>>, vector<4x8xf32>
    %cst = arith.constant dense<0.000000e+00> : vector<8x256xf32>
    %4 = tpu.matmul %2, %1, %cst {dimension_numbers = #tpu.dot_dimension_numbers<[1], [0], [0], [1], [0, 0, 1, 1], [], []>} : vector<8x4xf32>, vector<4x256xf32>, vector<8x256xf32> -> vector<8x256xf32>
    %c0_6 = arith.constant 0 : index
    %c0_7 = arith.constant 0 : index
    %5 = vector.load %arg5[%c0_6, %c0_7] : memref<8x1xf32, #tpu.memory_space<vmem>>, vector<8x1xf32>
    %6 = vector.broadcast %5 : vector<8x1xf32> to vector<8x256xf32>
    %7 = arith.addf %4, %6 : vector<8x256xf32>
    %cst_8 = arith.constant 5.000000e-01 : f32
    %8 = vector.broadcast %cst_8 : f32 to vector<8x256xf32>
    %9 = arith.mulf %8, %7 : vector<8x256xf32>
    %cst_9 = arith.constant 0.707106769 : f32
    %10 = vector.broadcast %cst_9 : f32 to vector<8x256xf32>
    %11 = arith.mulf %7, %10 : vector<8x256xf32>
    %12 = math.erf %11 : vector<8x256xf32>
    %cst_10 = arith.constant 1.000000e+00 : f32
    %13 = vector.broadcast %cst_10 : f32 to vector<8x256xf32>
    %14 = arith.addf %13, %12 : vector<8x256xf32>
    %15 = arith.mulf %9, %14 : vector<8x256xf32>
    %cst_11 = arith.constant dense<0.000000e+00> : vector<4x256xf32>
    %16 = tpu.matmul %3, %15, %cst_11 {dimension_numbers = #tpu.dot_dimension_numbers<[1], [0], [0], [1], [0, 0, 1, 1], [], []>} : vector<4x8xf32>, vector<8x256xf32>, vector<4x256xf32> -> vector<4x256xf32>
    %c0_12 = arith.constant 0 : index
    %c0_13 = arith.constant 0 : index
    %17 = vector.load %arg7[%c0_12, %c0_13] : memref<4x1xf32, #tpu.memory_space<vmem>>, vector<4x1xf32>
    %18 = vector.broadcast %17 : vector<4x1xf32> to vector<4x256xf32>
    %19 = arith.addf %16, %18 : vector<4x256xf32>
    %c0_14 = arith.constant 0 : index
    %c0_15 = arith.constant 0 : index
    %c0_16 = arith.constant 0 : index
    %20 = vector.load %arg8[%c0_14, %c0_15, %c0_16] : memref<1x4x256xf32, #tpu.memory_space<vmem>>, vector<1x4x256xf32>
    %21 = vector.shape_cast %20 : vector<1x4x256xf32> to vector<4x256xf32>
    %22 = vector.shape_cast %19 : vector<4x256xf32> to vector<1x4x256xf32>
    tpu.vector_store %arg8[%c0_14, %c0_15, %c0_16], %22 {strides = array<i32>} : memref<1x4x256xf32, #tpu.memory_space<vmem>>, vector<1x4x256xf32>,
    return
  }
  func.func @transform_0(%arg0: i32, %arg1: i32, %arg2: i32) -> (i32, i32, i32) {
    %c0_i32 = arith.constant 0 : i32
    %c0_i32_0 = arith.constant 0 : i32
    return %arg0, %c0_i32, %arg1 : i32, i32, i32
  }
  func.func @transform_1(%arg0: i32, %arg1: i32, %arg2: i32) -> (i32, i32) {
    %c0_i32 = arith.constant 0 : i32
    %c0_i32_0 = arith.constant 0 : i32
    return %arg2, %c0_i32 : i32, i32
  }
  func.func @transform_2(%arg0: i32, %arg1: i32, %arg2: i32) -> (i32, i32) {
    %c0_i32 = arith.constant 0 : i32
    %c0_i32_0 = arith.constant 0 : i32
    return %arg2, %c0_i32 : i32, i32
  }
  func.func @transform_3(%arg0: i32, %arg1: i32, %arg2: i32) -> (i32, i32) {
    %c0_i32 = arith.constant 0 : i32
    %c0_i32_0 = arith.constant 0 : i32
    return %c0_i32, %arg2 : i32, i32
  }
  func.func @transform_4(%arg0: i32, %arg1: i32, %arg2: i32) -> (i32, i32) {
    %c0_i32 = arith.constant 0 : i32
    %c0_i32_0 = arith.constant 0 : i32
    %c0_i32_1 = arith.constant 0 : i32
    return %c0_i32, %c0_i32_0 : i32, i32
  }
  func.func @transform_5(%arg0: i32, %arg1: i32, %arg2: i32) -> (i32, i32, i32) {
    %c0_i32 = arith.constant 0 : i32
    %c0_i32_0 = arith.constant 0 : i32
    return %arg0, %c0_i32, %arg1 : i32, i32, i32
  }
}

</mosaic_0001>

<llo_original>
// kernel: mlp_channels_first.1
$region0: #{mlp_channels_first.1}
  #allocation0 [shape = 'u32[]', space=smem, size = 0x4, offset = 0x4, fixed_abs, tag = 'smem constant byte address 0x4 - core index']
  #allocation1 [shape = 'u32[144,128]{1,0:T(1,128)}', space=vmem, size = 0x12000, scoped, tag = 'internal scratch']
  %s0 = inlined_call_operand.vmem [shape: f32[2,4,256], index: 0, kind: input, shape index: {}]
  %s1 = inlined_call_operand.vmem [shape: f32[8,4], index: 1, kind: input, shape index: {}]
  %s2 = inlined_call_operand.vmem [shape: f32[8,1], index: 2, kind: input, shape index: {}]
  %s3 = inlined_call_operand.vmem [shape: f32[4,8], index: 3, kind: input, shape index: {}]
  %s4 = inlined_call_operand.vmem [shape: f32[4,1], index: 4, kind: input, shape index: {}]
  %s5 = inlined_call_operand.vmem [shape: f32[2,4,256], index: 5, kind: output, shape index: {}]
  %s6 = sld [smem:[#allocation0]]
  $region53: #{mlp_channels_first.1} parent=0
    _
  %s8 = ssub.s32 1, %s6
  %s9 = scalar_select 0, %s8, %s6
  loop: start=0, step=1, limit=4
  $region2: #{mlp_channels_first.1} parent=0 // loop_pre_header
    _
  $region3: #{mlp_channels_first.1} parent=0 // loop_header
    %s11 = sphi 0, %s15
    %p12 = scmp.ge.s32.totalorder %s11, 4
    %s18 = sphi 0, %s37
    %s19 = sphi 0, %s33
    %s20 = sphi 0, %s29
    %s21 = sphi 0, %s18
    %s22 = sphi 0, %s19
    %s23 = sphi 0, %s20
    %s24 = sphi 0, %s21
    %s25 = sphi 0, %s22
    %s26 = sphi 0, %s23
    %s42 = sphi 0, %s44
    %s45 = sphi 0, %s42
    %s46 = sphi 0, %s45
    %s62 = sphi 0, %s46
    %s68 = sphi 0, %s70
    %s71 = sphi 0, %s68
    %s72 = sphi 0, %s71
    %s88 = sphi 0, %s72
    %s94 = sphi 0, %s96
    %s97 = sphi 0, %s94
    %s98 = sphi 0, %s97
    %s114 = sphi 0, %s98
    %s120 = sphi 0, %s122
    %s123 = sphi 0, %s120
    %s124 = sphi 0, %s123
    %s140 = sphi 0, %s124
    %s144 = sphi 0, %s144
    %s146 = sphi 0, %s144
    %s147 = sphi 0, %s146
    %s161 = sphi 0, %s147
    %s169 = sphi 0, %s171
    %s172 = sphi 0, %s169
    %s173 = sphi 0, %s172
    %s189 = sphi 0, %s173
  $region4: #{mlp_channels_first.1} parent=0 // loop_header_branch
    %14 = sbr.rel (%p12) target = $region8
  $region5: #{mlp_channels_first.1} parent=0 // loop_body
    %s16 = ssub.s32 %s11, 1
    %s17 = ssub.s32 %s11, 2
    %s27 = sadd.s32 1, %s20
    %p28 = scmp.ge.s32.totalorder %s27, 1
    %s29 = scalar_select %p28, 0, %s27
    %s30 = sadd.s32 1, %s19
    %s31 = scalar_select %p28, %s30, %s19
    %p32 = scmp.ge.s32.totalorder %s31, 1
    %s33 = scalar_select %p32, 0, %s31
    %s34 = sadd.s32 1, %s18
    %s35 = scalar_select %p32, %s34, %s18
    %p36 = scmp.ge.s32.totalorder %s35, 2
    %s37 = scalar_select %p36, 0, %s35
    %s38 = ssub.s32 %s18, %s37
    %s39 = ssub.s32 %s19, %s33
    %s40 = sor.u32 %s38, %s39
    %p41 = scmp.eq.s32.totalorder %s40, 0
    %s43 = sadd.s32 %s42, 1
    %s44 = scalar_select %p41, %s42, %s43
    %p47 = pneg %p41
    %p48 = scmp.eq.s32.totalorder %s11, 1
    %p49 = por %p47, %p48
    %p50 = scmp.ne.s32.totalorder %s42, %s45
    %p51 = scmp.eq.s32.totalorder %s11, 0
    %p52 = por %p50, %p51
    %p53 = scmp.ne.s32.totalorder %s42, %s45
    %p54 = scmp.eq.s32.totalorder %s16, 1
    %p55 = por %p53, %p54
    %p56 = scmp.ne.s32.totalorder %s45, %s46
    %p57 = scmp.eq.s32.totalorder %s16, 0
    %p58 = por %p56, %p57
    %p59 = scmp.ne.s32.totalorder %s45, %s46
    %p60 = scmp.eq.s32.totalorder %s17, 1
    %p61 = por %p59, %p60
    %p63 = scmp.ne.s32.totalorder %s46, %s62
    %p64 = scmp.eq.s32.totalorder %s17, 0
    %p65 = por %p63, %p64
    %s66 = ssub.s32 %s20, %s29
    %p67 = scmp.eq.s32.totalorder %s66, 0
    %s69 = sadd.s32 %s68, 1
    %s70 = scalar_select %p67, %s68, %s69
    %p73 = pneg %p67
    %p74 = scmp.eq.s32.totalorder %s11, 1
    %p75 = por %p73, %p74
    %p76 = scmp.ne.s32.totalorder %s68, %s71
    %p77 = scmp.eq.s32.totalorder %s11, 0
    %p78 = por %p76, %p77
    %p79 = scmp.ne.s32.totalorder %s68, %s71
    %p80 = scmp.eq.s32.totalorder %s16, 1
    %p81 = por %p79, %p80
    %p82 = scmp.ne.s32.totalorder %s71, %s72
    %p83 = scmp.eq.s32.totalorder %s16, 0
    %p84 = por %p82, %p83
    %p85 = scmp.ne.s32.totalorder %s71, %s72
    %p86 = scmp.eq.s32.totalorder %s17, 1
    %p87 = por %p85, %p86
    %p89 = scmp.ne.s32.totalorder %s72, %s88
    %p90 = scmp.eq.s32.totalorder %s17, 0
    %p91 = por %p89, %p90
    %s92 = ssub.s32 %s20, %s29
    %p93 = scmp.eq.s32.totalorder %s92, 0
    %s95 = sadd.s32 %s94, 1
    %s96 = scalar_select %p93, %s94, %s95
    %p99 = pneg %p93
    %p100 = scmp.eq.s32.totalorder %s11, 1
    %p101 = por %p99, %p100
    %p102 = scmp.ne.s32.totalorder %s94, %s97
    %p103 = scmp.eq.s32.totalorder %s11, 0
    %p104 = por %p102, %p103
    %p105 = scmp.ne.s32.totalorder %s94, %s97
    %p106 = scmp.eq.s32.totalorder %s16, 1
    %p107 = por %p105, %p106
    %p108 = scmp.ne.s32.totalorder %s97, %s98
    %p109 = scmp.eq.s32.totalorder %s16, 0
    %p110 = por %p108, %p109
    %p111 = scmp.ne.s32.totalorder %s97, %s98
    %p112 = scmp.eq.s32.totalorder %s17, 1
    %p113 = por %p111, %p112
    %p115 = scmp.ne.s32.totalorder %s98, %s114
    %p116 = scmp.eq.s32.totalorder %s17, 0
    %p117 = por %p115, %p116
    %s118 = ssub.s32 %s20, %s29
    %p119 = scmp.eq.s32.totalorder %s118, 0
    %s121 = sadd.s32 %s120, 1
    %s122 = scalar_select %p119, %s120, %s121
    %p125 = pneg %p119
    %p126 = scmp.eq.s32.totalorder %s11, 1
    %p127 = por %p125, %p126
    %p128 = scmp.ne.s32.totalorder %s120, %s123
    %p129 = scmp.eq.s32.totalorder %s11, 0
    %p130 = por %p128, %p129
    %p131 = scmp.ne.s32.totalorder %s120, %s123
    %p132 = scmp.eq.s32.totalorder %s16, 1
    %p133 = por %p131, %p132
    %p134 = scmp.ne.s32.totalorder %s123, %s124
    %p135 = scmp.eq.s32.totalorder %s16, 0
    %p136 = por %p134, %p135
    %p137 = scmp.ne.s32.totalorder %s123, %s124
    %p138 = scmp.eq.s32.totalorder %s17, 1
    %p139 = por %p137, %p138
    %p141 = scmp.ne.s32.totalorder %s124, %s140
    %p142 = scmp.eq.s32.totalorder %s17, 0
    %p143 = por %p141, %p142
    %s145 = sadd.s32 %s144, 1
    %p148 = scmp.eq.s32.totalorder %s11, 1
    %p149 = scmp.ne.s32.totalorder %s144, %s146
    %p150 = scmp.eq.s32.totalorder %s11, 0
    %p151 = por %p149, %p150
    %p152 = scmp.ne.s32.totalorder %s144, %s146
    %p153 = scmp.eq.s32.totalorder %s16, 1
    %p154 = por %p152, %p153
    %p155 = scmp.ne.s32.totalorder %s146, %s147
    %p156 = scmp.eq.s32.totalorder %s16, 0
    %p157 = por %p155, %p156
    %p158 = scmp.ne.s32.totalorder %s146, %s147
    %p159 = scmp.eq.s32.totalorder %s17, 1
    %p160 = por %p158, %p159
    %p162 = scmp.ne.s32.totalorder %s147, %s161
    %p163 = scmp.eq.s32.totalorder %s17, 0
    %p164 = por %p162, %p163
    %s165 = ssub.s32 %s18, %s37
    %s166 = ssub.s32 %s19, %s33
    %s167 = sor.u32 %s165, %s166
    %p168 = scmp.eq.s32.totalorder %s167, 0
    %s170 = sadd.s32 %s169, 1
    %s171 = scalar_select %p168, %s169, %s170
    %p174 = pneg %p168
    %p175 = scmp.eq.s32.totalorder %s11, 1
    %p176 = por %p174, %p175
    %p177 = scmp.ne.s32.totalorder %s169, %s172
    %p178 = scmp.eq.s32.totalorder %s11, 0
    %p179 = por %p177, %p178
    %p180 = scmp.ne.s32.totalorder %s169, %s172
    %p181 = scmp.eq.s32.totalorder %s16, 1
    %p182 = por %p180, %p181
    %p183 = scmp.ne.s32.totalorder %s172, %s173
    %p184 = scmp.eq.s32.totalorder %s16, 0
    %p185 = por %p183, %p184
    %p186 = scmp.ne.s32.totalorder %s172, %s173
    %p187 = scmp.eq.s32.totalorder %s17, 1
    %p188 = por %p186, %p187
    %p190 = scmp.ne.s32.totalorder %s173, %s189
    %p191 = scmp.eq.s32.totalorder %s17, 0
    %p192 = por %p190, %p191
    %p193 = scmp.le.s32.totalorder 1, %s11
    %p194 = scmp.lt.s32.totalorder %s11, 3
    %p195 = pnand %p193, %p194
    %p196 = pneg %p195
    // Predicated region
    $region9: #{mlp_channels_first.1} parent=5 // pred_check
      _
    $region10: #{mlp_channels_first.1} parent=5 // pred_check_branch
      %198 = sbr.rel (%p195) target = $region12
    $region11: #{mlp_channels_first.1} parent=5 // pred_region
      %s199 = ssub.s32 %s11, 1
      // Predicated region
      $region13: #{mlp_channels_first.1} parent=11 // pred_check
        %p200 = pneg %p84
      $region14: #{mlp_channels_first.1} parent=11 // pred_check_branch
        %202 = sbr.rel (%p200) target = $region16
      $region15: #{mlp_channels_first.1} parent=11 // pred_region
        %p203 = scmp.lt.s32.totalorder %s23, 0
        %s204 = scalar_select %p203, %s23, 0
        %s205 = smul.addr %s204, 8
        %s206 = scalar_lea.vmem %s1, %s205
      $region16: #{mlp_channels_first.1} parent=11 // pred_fallthru
        _
      // Predicated region
      $region17: #{mlp_channels_first.1} parent=11 // pred_check
        %p207 = pneg %p110
      $region18: #{mlp_channels_first.1} parent=11 // pred_check_branch
        %209 = sbr.rel (%p207) target = $region20
      $region19: #{mlp_channels_first.1} parent=11 // pred_region
        %p210 = scmp.lt.s32.totalorder %s23, 0
        %s211 = scalar_select %p210, %s23, 0
        %s212 = smul.addr %s211, 8
        %s213 = scalar_lea.vmem %s2, %s212
      $region20: #{mlp_channels_first.1} parent=11 // pred_fallthru
        _
      // Predicated region
      $region21: #{mlp_channels_first.1} parent=11 // pred_check
        %p214 = pneg %p136
      $region22: #{mlp_channels_first.1} parent=11 // pred_check_branch
        %216 = sbr.rel (%p214) target = $region24
      $region23: #{mlp_channels_first.1} parent=11 // pred_region
        %p217 = scmp.lt.s32.totalorder %s23, 0
        %s218 = scalar_select %p217, %s23, 0
        %s219 = smul.addr %s218, 4
        %s220 = scalar_lea.vmem %s3, %s219
      $region24: #{mlp_channels_first.1} parent=11 // pred_fallthru
        _
      // Predicated region
      $region25: #{mlp_channels_first.1} parent=11 // pred_check
        %p221 = pneg %p157
      $region26: #{mlp_channels_first.1} parent=11 // pred_check_branch
        %223 = sbr.rel (%p221) target = $region28
      $region27: #{mlp_channels_first.1} parent=11 // pred_region
        _
      $region28: #{mlp_channels_first.1} parent=11 // pred_fallthru
        _
    $region12: #{mlp_channels_first.1} parent=5 // pred_fallthru
      _
    %p224 = scmp.lt.s32.totalorder %s11, 2
    // Predicated region
    $region29: #{mlp_channels_first.1} parent=5 // pred_check
      %p225 = pneg %p224
    $region30: #{mlp_channels_first.1} parent=5 // pred_check_branch
      %227 = sbr.rel (%p225) target = $region32
    $region31: #{mlp_channels_first.1} parent=5 // pred_region
      // Predicated region
      $region33: #{mlp_channels_first.1} parent=31 // pred_check
        %p228 = pneg %p52
      $region34: #{mlp_channels_first.1} parent=31 // pred_check_branch
        %230 = sbr.rel (%p228) target = $region36
      $region35: #{mlp_channels_first.1} parent=31 // pred_region
        %s231 = smul.u32 2, %s19
        %p232 = scmp.lt.s32.totalorder %s18, 1
        %s233 = scalar_select %p232, %s18, 1
        %p234 = scmp.lt.s32.totalorder %s231, 1
        %s235 = scalar_select %p234, %s231, 1
        %s236 = smul.addr %s233, 2
        %s237 = sadd.s32 %s235, %s236
        %s238 = smul.addr %s237, 4
        %s239 = scalar_lea.vmem %s0, %s238
        %s240 = smul.u32 2, %s19
      $region36: #{mlp_channels_first.1} parent=31 // pred_fallthru
        _
    $region32: #{mlp_channels_first.1} parent=5 // pred_fallthru
      _
    %p241 = scmp.le.s32.totalorder 1, %s11
    %p242 = scmp.lt.s32.totalorder %s11, 3
    %p243 = pnand %p241, %p242
    %p244 = pneg %p243
    // Predicated region
    $region37: #{mlp_channels_first.1} parent=5 // pred_check
      _
    $region38: #{mlp_channels_first.1} parent=5 // pred_check_branch
      %246 = sbr.rel (%p243) target = $region40
    $region39: #{mlp_channels_first.1} parent=5 // pred_region
      %s247 = ssub.s32 %s11, 1
      %s248 = smul.u32 2, %s22
      %p249 = scmp.lt.s32.totalorder %s21, 1
      %s250 = scalar_select %p249, %s21, 1
      %p251 = scmp.lt.s32.totalorder %s248, 1
      %s252 = scalar_select %p251, %s248, 1
      %s253 = smul.addr %s250, 2
      %s254 = sadd.s32 %s252, %s253
      %s255 = smul.addr %s254, 4
      %s256 = scalar_lea.vmem %s0, %s255
      %p257 = pneg %p58
      %p258 = pneg %p55
      %p259 = scmp.lt.s32.totalorder %s23, 0
      %s260 = scalar_select %p259, %s23, 0
      %s261 = smul.addr %s260, 8
      %s262 = scalar_lea.vmem %s1, %s261
      %p263 = pneg %p84
      %p264 = pneg %p81
      %p265 = scmp.lt.s32.totalorder %s23, 0
      %s266 = scalar_select %p265, %s23, 0
      %s267 = smul.addr %s266, 8
      %s268 = scalar_lea.vmem %s2, %s267
      %p269 = pneg %p110
      %p270 = pneg %p107
      %p271 = scmp.lt.s32.totalorder %s23, 0
      %s272 = scalar_select %p271, %s23, 0
      %s273 = smul.addr %s272, 4
      %s274 = scalar_lea.vmem %s3, %s273
      %p275 = pneg %p136
      %p276 = pneg %p133
      %p277 = pneg %p157
      %p278 = pneg %p154
      %p279 = pneg %p185
      %p280 = pneg %p182
      %s281 = smul.u32 2, %s22
      %p282 = scmp.lt.s32.totalorder %s21, 1
      %s283 = scalar_select %p282, %s21, 1
      %p284 = scmp.lt.s32.totalorder %s281, 1
      %s285 = scalar_select %p284, %s281, 1
      %s286 = smul.addr %s283, 2
      %s287 = sadd.s32 %s285, %s286
      %s288 = smul.addr %s287, 4
      %s289 = scalar_lea.vmem %s5, %s288
      %s290 = smul.u32 2, %s22
      %p291 = scmp.lt.s32.totalorder %s21, 1
      %s292 = scalar_select %p291, %s21, 1
      %p293 = scmp.lt.s32.totalorder %s290, 1
      %s294 = scalar_select %p293, %s290, 1
      %s295 = smul.addr %s292, 2
      %s296 = sadd.s32 %s294, %s295
      %s297 = smul.addr %s296, 4
      %s298 = scalar_lea.vmem %s0, %s297
      %s299 = smul.u32 2, %s22
      %p300 = scmp.lt.s32.totalorder %s23, 0
      %s301 = scalar_select %p300, %s23, 0
      %s302 = smul.addr %s301, 8
      %s303 = scalar_lea.vmem %s1, %s302
      %p304 = scmp.lt.s32.totalorder %s23, 0
      %s305 = scalar_select %p304, %s23, 0
      %s306 = smul.addr %s305, 8
      %s307 = scalar_lea.vmem %s2, %s306
      %p308 = scmp.lt.s32.totalorder %s23, 0
      %s309 = scalar_select %p308, %s23, 0
      %s310 = smul.addr %s309, 4
      %s311 = scalar_lea.vmem %s3, %s310
      %s312 = smul.u32 2, %s22
      %p313 = scmp.lt.s32.totalorder %s21, 1
      %s314 = scalar_select %p313, %s21, 1
      %p315 = scmp.lt.s32.totalorder %s312, 1
      %s316 = scalar_select %p315, %s312, 1
      %s317 = smul.addr %s314, 2
      %s318 = sadd.s32 %s316, %s317
      %s319 = smul.addr %s318, 4
      %s320 = scalar_lea.vmem %s5, %s319
      %s321 = smul.u32 2, %s22
      %v322 = vld [vmem:[%s298] sm:$0xff]
      %v323 = vld [vmem:[%s303] sm:$0xff]
      %v324 = vld [vmem:[%s311] sm:$0xf]
      %v325 = vld [vmem:[%s307] sm:$0xff]
      %327 = vset.pattern.permute.xlu0 0
      %328 = vperm.xlu0 %327, %v325
      %v329 = vpop.permute.xlu0 %328
      %v332 = vcombine.high %v322, %v322
      %vm333 = vcmask 31744
      %v335 = vsel %vm333, %v323, 0
      %vm337 = vcmask 1043456
      %v338 = vsel %vm337, %v322, 0
      %v340 = vsel %vm337, %v332, 0
      %342 = vmatprep.subr.mxu0 0.0
      %343 = vmatpush1.msra.mxu0 0.0
      %344 = vmatprep.subr.mxu0 0.0
      %345 = vmatpush1.msra.mxu0 0.0
      %346 = vmatprep.subr.mxu0 0.0
      %347 = vmatpush1.msra.mxu0 0.0
      %348 = vmatprep.subr.mxu0 0.0
      %349 = vmatpush1.msra.mxu0 0.0
      %350 = vmatprep.subr.mxu0 0.0
      %351 = vmatpush1.msra.mxu0 0.0
      %352 = vmatprep.subr.mxu0 0.0
      %353 = vmatpush1.msra.mxu0 0.0
      %354 = vmatprep.subr.mxu0 0.0
      %355 = vmatpush1.msra.mxu0 0.0
      %356 = vmatprep.subr.mxu0 0.0
      %357 = vmatpush1.msra.mxu0 0.0
      %358 = vmatprep.subr.mxu0 0.0
      %359 = vmatpush1.msra.mxu0 0.0
      %360 = vmatprep.subr.mxu0 0.0
      %361 = vmatpush1.msra.mxu0 0.0
      %362 = vmatprep.subr.mxu0 0.0
      %363 = vmatpush1.msra.mxu0 0.0
      %364 = vmatprep.subr.mxu0 0.0
      %365 = vmatpush1.msra.mxu0 0.0
      %366 = vmatprep.subr.mxu0 0.0
      %367 = vmatpush1.msra.mxu0 0.0
      %368 = vmatprep.subr.mxu0 0.0
      %369 = vmatpush1.msra.mxu0 0.0
      %370 = vmatprep.subr.mxu0 0.0
      %371 = vmatpush1.msra.mxu0 0.0
      %372 = vmatprep.subr.mxu0 %v340
      %373 = vmatpush1.msra.mxu0 %v338
      %374 = vmatprep.subr.mxu0 0.0
      %375 = vmatpush2.msra.mxu0 0.0
      %376 = vmatprep.subr.mxu0 0.0
      %377 = vmatpush2.msra.mxu0 0.0
      %378 = vmatprep.subr.mxu0 0.0
      %379 = vmatpush2.msra.mxu0 0.0
      %380 = vmatprep.subr.mxu0 0.0
      %381 = vmatpush2.msra.mxu0 0.0
      %382 = vmatprep.subr.mxu0 0.0
      %383 = vmatpush2.msra.mxu0 0.0
      %384 = vmatprep.subr.mxu0 0.0
      %385 = vmatpush2.msra.mxu0 0.0
      %386 = vmatprep.subr.mxu0 0.0
      %387 = vmatpush2.msra.mxu0 0.0
      %388 = vmatprep.subr.mxu0 0.0
      %389 = vmatpush2.msra.mxu0 0.0
      %390 = vmatprep.subr.mxu0 0.0
      %391 = vmatpush2.msra.mxu0 0.0
      %392 = vmatprep.subr.mxu0 0.0
      %393 = vmatpush2.msra.mxu0 0.0
      %394 = vmatprep.subr.mxu0 0.0
      %395 = vmatpush2.msra.mxu0 0.0
      %396 = vmatprep.subr.mxu0 0.0
      %397 = vmatpush2.msra.mxu0 0.0
      %398 = vmatprep.subr.mxu0 0.0
      %399 = vmatpush2.msra.mxu0 0.0
      %400 = vmatprep.subr.mxu0 0.0
      %401 = vmatpush2.msra.mxu0 0.0
      %402 = vmatprep.subr.mxu0 0.0
      %403 = vmatpush2.msra.mxu0 0.0
      %404 = vmatprep.subr.mxu0 0.0
      %405 = vmatpush2.msra.mxu0 0.0
      %406 = vmatprep.mubr.f32.mxu0 0.0
      %407 = vmatmul.mubr.f32.gmra.mxu0 %v335
      %v408 = vpop.f32.mrf.mxu0
      %v409 = vadd.f32 %v329, %v408
      %v410 = vpop.f32.mrf.mxu0
      %v411 = vadd.f32 %v329, %v410
      %412 = vdwg.mxu0
      %v413 = vmul.f32 %v409, 0.5
      %v414 = vmul.f32 %v411, 0.5
      %v415 = vmul.f32 %v409, 0.70710677
      %v416 = vmul.f32 %v411, 0.70710677
      %v417 = verf.f32.pop %v415
      %v418 = verf.f32.pop %v416
      %v419 = vadd.f32 %v417, 1.0
      %v420 = vadd.f32 %v418, 1.0
      %v421 = vmul.f32 %v413, %v419
      %v422 = vmul.f32 %v414, %v420
      %v423 = vld [vmem:[%s4] sm:$0xf]
      %425 = vset.pattern.permute.xlu0 0
      %426 = vperm.xlu0 %425, %v423
      %v427 = vpop.permute.xlu0 %426
      %vm429 = vcmask 64512
      %v431 = vsel %vm429, %v324, 0
      %433 = vmatprep.subr.mxu0 0.0
      %434 = vmatpush1.msra.mxu0 0.0
      %435 = vmatprep.subr.mxu0 0.0
      %436 = vmatpush1.msra.mxu0 0.0
      %437 = vmatprep.subr.mxu0 0.0
      %438 = vmatpush1.msra.mxu0 0.0
      %439 = vmatprep.subr.mxu0 0.0
      %440 = vmatpush1.msra.mxu0 0.0
      %441 = vmatprep.subr.mxu0 0.0
      %442 = vmatpush1.msra.mxu0 0.0
      %443 = vmatprep.subr.mxu0 0.0
      %444 = vmatpush1.msra.mxu0 0.0
      %445 = vmatprep.subr.mxu0 0.0
      %446 = vmatpush1.msra.mxu0 0.0
      %447 = vmatprep.subr.mxu0 0.0
      %448 = vmatpush1.msra.mxu0 0.0
      %449 = vmatprep.subr.mxu0 0.0
      %450 = vmatpush1.msra.mxu0 0.0
      %451 = vmatprep.subr.mxu0 0.0
      %452 = vmatpush1.msra.mxu0 0.0
      %453 = vmatprep.subr.mxu0 0.0
      %454 = vmatpush1.msra.mxu0 0.0
      %455 = vmatprep.subr.mxu0 0.0
      %456 = vmatpush1.msra.mxu0 0.0
      %457 = vmatprep.subr.mxu0 0.0
      %458 = vmatpush1.msra.mxu0 0.0
      %459 = vmatprep.subr.mxu0 0.0
      %460 = vmatpush1.msra.mxu0 0.0
      %461 = vmatprep.subr.mxu0 0.0
      %462 = vmatpush1.msra.mxu0 0.0
      %463 = vmatprep.subr.mxu0 %v422
      %464 = vmatpush1.msra.mxu0 %v421
      %465 = vmatprep.subr.mxu0 0.0
      %466 = vmatpush2.msra.mxu0 0.0
      %467 = vmatprep.subr.mxu0 0.0
      %468 = vmatpush2.msra.mxu0 0.0
      %469 = vmatprep.subr.mxu0 0.0
      %470 = vmatpush2.msra.mxu0 0.0
      %471 = vmatprep.subr.mxu0 0.0
      %472 = vmatpush2.msra.mxu0 0.0
      %473 = vmatprep.subr.mxu0 0.0
      %474 = vmatpush2.msra.mxu0 0.0
      %475 = vmatprep.subr.mxu0 0.0
      %476 = vmatpush2.msra.mxu0 0.0
      %477 = vmatprep.subr.mxu0 0.0
      %478 = vmatpush2.msra.mxu0 0.0
      %479 = vmatprep.subr.mxu0 0.0
      %480 = vmatpush2.msra.mxu0 0.0
      %481 = vmatprep.subr.mxu0 0.0
      %482 = vmatpush2.msra.mxu0 0.0
      %483 = vmatprep.subr.mxu0 0.0
      %484 = vmatpush2.msra.mxu0 0.0
      %485 = vmatprep.subr.mxu0 0.0
      %486 = vmatpush2.msra.mxu0 0.0
      %487 = vmatprep.subr.mxu0 0.0
      %488 = vmatpush2.msra.mxu0 0.0
      %489 = vmatprep.subr.mxu0 0.0
      %490 = vmatpush2.msra.mxu0 0.0
      %491 = vmatprep.subr.mxu0 0.0
      %492 = vmatpush2.msra.mxu0 0.0
      %493 = vmatprep.subr.mxu0 0.0
      %494 = vmatpush2.msra.mxu0 0.0
      %495 = vmatprep.subr.mxu0 0.0
      %496 = vmatpush2.msra.mxu0 0.0
      %497 = vmatprep.mubr.f32.mxu0 0.0
      %498 = vmatmul.mubr.f32.gmra.mxu0 %v431
      %v499 = vpop.f32.mrf.mxu0
      %v500 = vadd.f32 %v427, %v499
      %v501 = vpop.f32.mrf.mxu0
      %v502 = vadd.f32 %v427, %v501
      %503 = vdwg.mxu0
      %v506 = vcombine.low %v500, %v502
      %508 = vst [vmem:[%s320] sm:$0xff] %v506
      %s509 = smul.u32 2, %s22
      %p510 = scmp.lt.s32.totalorder %s21, 1
      %s511 = scalar_select %p510, %s21, 1
      %p512 = scmp.lt.s32.totalorder %s509, 1
      %s513 = scalar_select %p512, %s509, 1
      %s514 = smul.addr %s511, 2
      %s515 = sadd.s32 %s513, %s514
      %s516 = smul.addr %s515, 4
      %s517 = scalar_lea.vmem %s5, %s516
      // Predicated region
      $region41: #{mlp_channels_first.1} parent=39 // pred_check
        %p518 = pneg %p182
      $region42: #{mlp_channels_first.1} parent=39 // pred_check_branch
        %520 = sbr.rel (%p518) target = $region44
      $region43: #{mlp_channels_first.1} parent=39 // pred_region
        %s521 = smul.u32 2, %s22
      $region44: #{mlp_channels_first.1} parent=39 // pred_fallthru
        _
    $region40: #{mlp_channels_first.1} parent=5 // pred_fallthru
      _
    %p522 = scmp.le.s32.totalorder 2, %s11
    // Predicated region
    $region45: #{mlp_channels_first.1} parent=5 // pred_check
      %p523 = pneg %p522
    $region46: #{mlp_channels_first.1} parent=5 // pred_check_branch
      %525 = sbr.rel (%p523) target = $region48
    $region47: #{mlp_channels_first.1} parent=5 // pred_region
      %s526 = ssub.s32 %s11, 2
      // Predicated region
      $region49: #{mlp_channels_first.1} parent=47 // pred_check
        %p527 = pneg %p188
      $region50: #{mlp_channels_first.1} parent=47 // pred_check_branch
        %529 = sbr.rel (%p527) target = $region52
      $region51: #{mlp_channels_first.1} parent=47 // pred_region
        %s530 = smul.u32 2, %s25
        %p531 = scmp.lt.s32.totalorder %s24, 1
        %s532 = scalar_select %p531, %s24, 1
        %p533 = scmp.lt.s32.totalorder %s530, 1
        %s534 = scalar_select %p533, %s530, 1
        %s535 = smul.addr %s532, 2
        %s536 = sadd.s32 %s534, %s535
        %s537 = smul.addr %s536, 4
        %s538 = scalar_lea.vmem %s5, %s537
      $region52: #{mlp_channels_first.1} parent=47 // pred_fallthru
        _
    $region48: #{mlp_channels_first.1} parent=5 // pred_fallthru
      _
  $region6: #{mlp_channels_first.1} parent=0 // loop_footer
    %s15 = sadd.s32 1, %s11
  $region7: #{mlp_channels_first.1} parent=0 // loop_footer_branch
    %10 = sbr.rel target = $region3
  $region8: #{mlp_channels_first.1} parent=0 // loop_exit
    _

</llo_original>
